<compile_context>
chip_gen: v6e
topology: v6e:2x2x1
jax: 0.10.0
libtpu: 0.0.40
codegen_flags: <defaults>
</compile_context>

<pallas_src>
import jax
import jax.numpy as jnp
from jax import lax
from jax.experimental import pallas as pl
from jax.experimental.pallas import tpu as pltpu  # noqa: F401  (TPU backend)

F_IN, F_HID, F_OUT = 5, 6, 7
LANE = 128   # output feature dims padded to the 128-lane width (lane-dense stores)
K_PAD = 8    # contraction dims padded only to the 8-sublane minimum
SUBL = 8     # node dim padded to a multiple of 8 sublanes


# ----------------------------------------------------------------------------
# Pallas kernel: fused 2-layer GCN forward.
#   x1 = A_hat @ (x0 @ W1^T) + b1
#   x2 = A_hat @ (x1 @ W2^T) + b2
# ----------------------------------------------------------------------------
def gnn_kernel(a_ref, x0_ref, w1_ref, b1_ref, w2_ref, b2_ref, x1_ref, x2_ref):
    a = a_ref[...]                                   # (n_pad, n_pad) dense A_hat

    # ---- layer 1: GCNConv(5, 6) ----  K = 8 (F_IN padded), N = 128 lanes
    h1 = jnp.dot(x0_ref[...], w1_ref[...], preferred_element_type=jnp.float32)
    x1 = jnp.dot(a, h1, preferred_element_type=jnp.float32) + b1_ref[...]
    x1_ref[...] = x1                                 # lane-dense (n_pad, 128) store

    # ---- layer 2: GCNConv(6, 7) ----
    # Lanes >= F_HID of x1 are exactly zero (W1 / b1 padding is zero), so a
    # static 8-lane slice turns layer 2 into another K=8 matmul against the
    # (8, 128) W2 instead of DMAing a 64 KiB zero-padded (128, 128) weight.
    x1_k = x1[:, :K_PAD]                             # (n_pad, 8)
    h2 = jnp.dot(x1_k, w2_ref[...], preferred_element_type=jnp.float32)
    x2 = jnp.dot(a, h2, preferred_element_type=jnp.float32) + b2_ref[...]
    x2_ref[...] = x2


# ----------------------------------------------------------------------------
# Parameter padding: PyTorch Linear weights are (out, in); the kernel consumes
# W^T padded to (K_PAD, LANE).  Done ONCE per parameter set (hoisted out of the
# per-forward path).
# ----------------------------------------------------------------------------
def pad_params(params):
    w1t = params["w1"].T  # (5, 6)
    w2t = params["w2"].T  # (6, 7)
    return {
        "w1": jnp.zeros((K_PAD, LANE), jnp.float32).at[:F_IN, :F_HID].set(w1t),
        "b1": jnp.zeros((1, LANE), jnp.float32).at[0, :F_HID].set(params["b1"]),
        "w2": jnp.zeros((K_PAD, LANE), jnp.float32).at[:F_HID, :F_OUT].set(w2t),
        "b2": jnp.zeros((1, LANE), jnp.float32).at[0, :F_OUT].set(params["b2"]),
    }


# ----------------------------------------------------------------------------
# GCN normalization (add self-loops, D^-1/2 A D^-1/2) as a dense matrix, built
# scatter-free via one-hot matmuls, directly at the padded node count.
# Padded nodes get zero degree -> zero rows/cols.
# ----------------------------------------------------------------------------
def gcn_dense_norm_adj_padded(edge_index, num_nodes, n_pad):
    src, dst = edge_index[0], edge_index[1]
    loop = jnp.arange(num_nodes, dtype=edge_index.dtype)
    src = jnp.concatenate([src, loop])
    dst = jnp.concatenate([dst, loop])

    ids = jnp.arange(n_pad, dtype=src.dtype)
    oh_src = (src[:, None] == ids[None, :]).astype(jnp.float32)   # (E, n_pad)
    oh_dst = (dst[:, None] == ids[None, :]).astype(jnp.float32)   # (E, n_pad)

    deg = jnp.sum(oh_dst, axis=0)                                 # in-degree incl. self loops
    dinv = jnp.where(deg > 0.0, lax.rsqrt(deg), 0.0)
    norm = (oh_dst @ dinv) * (oh_src @ dinv)                      # == dinv[dst] * dinv[src]

    # A_hat[d, s] = sum_{e: dst[e]==d, src[e]==s} norm[e]   (duplicate edges sum,
    # matching PyG message passing / the scatter-add formulation)
    return (oh_dst * norm[:, None]).T @ oh_src                    # (n_pad, n_pad)


# ----------------------------------------------------------------------------
# Forward wrapper: build A_hat + pad x0, run the fused Pallas kernel, slice.
# ----------------------------------------------------------------------------
@jax.jit
def gnn_forward(x0, edge_index, padded_params):
    n = x0.shape[0]
    n_pad = ((n + SUBL - 1) // SUBL) * SUBL

    a_pad = gcn_dense_norm_adj_padded(edge_index, n, n_pad)        # (n_pad, n_pad)
    x0_pad = jnp.zeros((n_pad, K_PAD), jnp.float32).at[:n, :F_IN].set(x0)

    x1_pad, x2_pad = pl.pallas_call(
        gnn_kernel,
        out_shape=(
            jax.ShapeDtypeStruct((n_pad, LANE), jnp.float32),
            jax.ShapeDtypeStruct((n_pad, LANE), jnp.float32),
        ),
    )(
        a_pad,
        x0_pad,
        padded_params["w1"],
        padded_params["b1"],
        padded_params["w2"],
        padded_params["b2"],
    )

    # Note: padded rows of x1_pad/x2_pad contain the bias (0 @ W + b); they are
    # never fed back (A_hat's padded columns are zero) and are sliced off here.
    return [x1_pad[:n, :F_HID], x2_pad[:n, :F_OUT]]


# ----------------------------------------------------------------------------
# Pure-JAX reference (independent scatter-based A_hat) for correctness check.
# ----------------------------------------------------------------------------
def gnn_reference(x0, edge_index, params):
    n = x0.shape[0]
    src, dst = edge_index[0], edge_index[1]
    loop = jnp.arange(n, dtype=edge_index.dtype)
    src = jnp.concatenate([src, loop])
    dst = jnp.concatenate([dst, loop])
    deg = jnp.zeros((n,), jnp.float32).at[dst].add(1.0)
    dinv = jnp.where(deg > 0.0, lax.rsqrt(deg), 0.0)
    norm = dinv[src] * dinv[dst]
    a_hat = jnp.zeros((n, n), jnp.float32).at[dst, src].add(norm)
    x1 = a_hat @ (x0 @ params["w1"].T) + params["b1"]
    x2 = a_hat @ (x1 @ params["w2"].T) + params["b2"]
    return [x1, x2]


if __name__ == "__main__":
    key = jax.random.PRNGKey(0)
    k_x, k_w1, k_b1, k_w2, k_b2 = jax.random.split(key, 5)

    # Small graph: 8 nodes, 12 directed edges, 5 input features per node.
    num_nodes = 8
    x0 = jax.random.normal(k_x, (num_nodes, F_IN), dtype=jnp.float32)
    edge_index = jnp.array(
        [[0, 1, 1, 2, 2, 3, 3, 4, 4, 5, 6, 7],
         [1, 0, 2, 1, 3, 2, 4, 3, 5, 4, 7, 6]],
        dtype=jnp.int32,
    )

    # GCNConv(5,6) / GCNConv(6,7) parameters (PyTorch (out, in) layout).
    params = {
        "w1": jax.random.uniform(k_w1, (F_HID, F_IN), jnp.float32, -0.5, 0.5),
        "b1": jax.random.uniform(k_b1, (F_HID,), jnp.float32, -0.1, 0.1),
        "w2": jax.random.uniform(k_w2, (F_OUT, F_HID), jnp.float32, -0.5, 0.5),
        "b2": jax.random.uniform(k_b2, (F_OUT,), jnp.float32, -0.1, 0.1),
    }

    padded_params = pad_params(params)   # padding hoisted out of the call path

    x1, x2 = gnn_forward(x0, edge_index, padded_params)
    jax.block_until_ready((x1, x2))

    r1, r2 = gnn_reference(x0, edge_index, params)
    assert x1.shape == (num_nodes, F_HID) and x2.shape == (num_nodes, F_OUT)
    assert jnp.allclose(x1, r1, atol=1e-5, rtol=1e-5)
    assert jnp.allclose(x2, r2, atol=1e-5, rtol=1e-5)

    print("KERNEL_OK")
</pallas_src>

<mosaic_0001>
module attributes {stable_mosaic.version = 11 : i64} {
  func.func @gnn_kernel(%arg0: memref<8x8xf32, #tpu.memory_space<vmem>>, %arg1: memref<8x8xf32, #tpu.memory_space<vmem>>, %arg2: memref<8x128xf32, #tpu.memory_space<vmem>>, %arg3: memref<1x128xf32, #tpu.memory_space<vmem>>, %arg4: memref<8x128xf32, #tpu.memory_space<vmem>>, %arg5: memref<1x128xf32, #tpu.memory_space<vmem>>, %arg6: memref<8x128xf32, #tpu.memory_space<vmem>>, %arg7: memref<8x128xf32, #tpu.memory_space<vmem>>) attributes {dimension_semantics = [], scalar_prefetch = 0 : i64, scratch_operands = 0 : i64, tpu.core_type = #tpu.core_type<tc>} {
    %c0 = arith.constant 0 : index
    %c0_0 = arith.constant 0 : index
    %0 = vector.load %arg0[%c0, %c0_0] : memref<8x8xf32, #tpu.memory_space<vmem>>, vector<8x8xf32>
    %c0_1 = arith.constant 0 : index
    %c0_2 = arith.constant 0 : index
    %1 = vector.load %arg1[%c0_1, %c0_2] : memref<8x8xf32, #tpu.memory_space<vmem>>, vector<8x8xf32>
    %c0_3 = arith.constant 0 : index
    %c0_4 = arith.constant 0 : index
    %2 = vector.load %arg2[%c0_3, %c0_4] : memref<8x128xf32, #tpu.memory_space<vmem>>, vector<8x128xf32>
    %cst = arith.constant dense<0.000000e+00> : vector<8x128xf32>
    %3 = tpu.matmul %1, %2, %cst {dimension_numbers = #tpu.dot_dimension_numbers<[1], [0], [0], [1], [0, 0, 1, 1], [], []>} : vector<8x8xf32>, vector<8x128xf32>, vector<8x128xf32> -> vector<8x128xf32>
    %cst_5 = arith.constant dense<0.000000e+00> : vector<8x128xf32>
    %4 = tpu.matmul %0, %3, %cst_5 {dimension_numbers = #tpu.dot_dimension_numbers<[1], [0], [0], [1], [0, 0, 1, 1], [], []>} : vector<8x8xf32>, vector<8x128xf32>, vector<8x128xf32> -> vector<8x128xf32>
    %c0_6 = arith.constant 0 : index
    %c0_7 = arith.constant 0 : index
    %5 = vector.load %arg3[%c0_6, %c0_7] : memref<1x128xf32, #tpu.memory_space<vmem>>, vector<1x128xf32>
    %6 = vector.broadcast %5 : vector<1x128xf32> to vector<8x128xf32>
    %7 = arith.addf %4, %6 : vector<8x128xf32>
    %c0_8 = arith.constant 0 : index
    %c0_9 = arith.constant 0 : index
    %8 = vector.load %arg6[%c0_8, %c0_9] : memref<8x128xf32, #tpu.memory_space<vmem>>, vector<8x128xf32>
    tpu.vector_store %arg6[%c0_8, %c0_9], %7 {strides = array<i32>} : memref<8x128xf32, #tpu.memory_space<vmem>>, vector<8x128xf32>,
    %9 = vector.extract_strided_slice %7 {offsets = [0, 0], sizes = [8, 8], strides = [1, 1]} : vector<8x128xf32> to vector<8x8xf32>
    %c0_10 = arith.constant 0 : index
    %c0_11 = arith.constant 0 : index
    %10 = vector.load %arg4[%c0_10, %c0_11] : memref<8x128xf32, #tpu.memory_space<vmem>>, vector<8x128xf32>
    %cst_12 = arith.constant dense<0.000000e+00> : vector<8x128xf32>
    %11 = tpu.matmul %9, %10, %cst_12 {dimension_numbers = #tpu.dot_dimension_numbers<[1], [0], [0], [1], [0, 0, 1, 1], [], []>} : vector<8x8xf32>, vector<8x128xf32>, vector<8x128xf32> -> vector<8x128xf32>
    %cst_13 = arith.constant dense<0.000000e+00> : vector<8x128xf32>
    %12 = tpu.matmul %0, %11, %cst_13 {dimension_numbers = #tpu.dot_dimension_numbers<[1], [0], [0], [1], [0, 0, 1, 1], [], []>} : vector<8x8xf32>, vector<8x128xf32>, vector<8x128xf32> -> vector<8x128xf32>
    %c0_14 = arith.constant 0 : index
    %c0_15 = arith.constant 0 : index
    %13 = vector.load %arg5[%c0_14, %c0_15] : memref<1x128xf32, #tpu.memory_space<vmem>>, vector<1x128xf32>
    %14 = vector.broadcast %13 : vector<1x128xf32> to vector<8x128xf32>
    %15 = arith.addf %12, %14 : vector<8x128xf32>
    %c0_16 = arith.constant 0 : index
    %c0_17 = arith.constant 0 : index
    %16 = vector.load %arg7[%c0_16, %c0_17] : memref<8x128xf32, #tpu.memory_space<vmem>>, vector<8x128xf32>
    tpu.vector_store %arg7[%c0_16, %c0_17], %15 {strides = array<i32>} : memref<8x128xf32, #tpu.memory_space<vmem>>, vector<8x128xf32>,
    return
  }
}

</mosaic_0001>

<llo_original>
// kernel: mul.3
$region0: #{mul.3}
  #allocation0 [shape = 's32[1]{0}', space=sflag, size = 0x4, scoped, tag = 'scoped memory for mul.3']
  %s0 = inlined_call_operand.vmem [shape: f32[20], index: 0, kind: input, shape index: {}]
  %s1 = inlined_call_operand.vmem [shape: f32[20], index: 1, kind: input, shape index: {}]
  %s2 = inlined_call_operand.vmem [shape: bf16[20], index: 2, kind: output, shape index: {}]
  %v3 = vld [vmem:[%s0] sm:$0x1]
  %v4 = vld [vmem:[%s1] sm:$0x1]
  %5 = xla_tuple %v3, %v4
  %6 = xla_tuple %5
  %v7 = vmul.f32 %v3, %v4
  %8 = xla_tuple %v7
  %v9 = vpack.c.bf16 0.0, %v7
  %10 = vst [vmem:[%s2] sm:$0x1] %v9

// kernel: gnn_forward.1
$region0: #{gnn_forward.1}
  #allocation0 [shape = 'u32[]', space=smem, size = 0x4, offset = 0x4, fixed_abs, tag = 'smem constant byte address 0x4 - core index']
  #allocation1 [shape = 'u32[144,128]{1,0:T(1,128)}', space=vmem, size = 0x12000, scoped, tag = 'internal scratch']
  %s0 = inlined_call_operand.vmem [shape: f32[8,8], index: 0, kind: input, shape index: {}]
  %s1 = inlined_call_operand.vmem [shape: f32[8,8], index: 1, kind: input, shape index: {}]
  %s2 = inlined_call_operand.vmem [shape: f32[8,128], index: 2, kind: input, shape index: {}]
  %s3 = inlined_call_operand.vmem [shape: f32[1,128], index: 3, kind: input, shape index: {}]
  %s4 = inlined_call_operand.vmem [shape: f32[8,128], index: 4, kind: input, shape index: {}]
  %s5 = inlined_call_operand.vmem [shape: f32[1,128], index: 5, kind: input, shape index: {}]
  %s6 = inlined_call_operand.hbm [shape: f32[8,128], index: 6, kind: output, shape index: {0}]
  %s7 = inlined_call_operand.hbm [shape: f32[8,128], index: 7, kind: output, shape index: {1}]
  %8 = xla_tuple %s6, %s7
  %s9 = sld [smem:[#allocation0]]
  $region42: #{gnn_forward.1} parent=0
    _
  %s11 = ssub.s32 1, %s9
  %s12 = scalar_select 0, %s11, %s9
  $region1: #{gnn_forward.1} parent=0
    #allocation2 [shape = 'u8[4096]{0}', space=vmem, size = 0x1000, scoped, tag = 'output window, operand 0, single buffered']
    #allocation3 [shape = 's32[1]{0}', space=sflag, size = 0x4, scoped, tag = 'scoped memory for gnn_forward.1']
    #allocation4 [shape = 'u8[4096]{0}', space=vmem, size = 0x1000, scoped, tag = 'output window, operand 1, single buffered']
    #allocation5 [shape = 's32[1]{0}', space=sflag, size = 0x4, scoped, tag = 'scoped memory for gnn_forward.1']
    %13 = vsyncpa [#allocation3], 0
    %14 = vsyncpa [#allocation5], 0
    // Predicated region
    $region2: #{gnn_forward.1} parent=1 // pred_check
      _
    $region3: #{gnn_forward.1} parent=1 // pred_check_branch
      %16 = sbr.rel (0) target = $region5
    $region4: #{gnn_forward.1} parent=1 // pred_region
      _
    $region5: #{gnn_forward.1} parent=1 // pred_fallthru
      _
    // Predicated region
    $region6: #{gnn_forward.1} parent=1 // pred_check
      _
    $region7: #{gnn_forward.1} parent=1 // pred_check_branch
      %18 = sbr.rel (0) target = $region9
    $region8: #{gnn_forward.1} parent=1 // pred_region
      _
    $region9: #{gnn_forward.1} parent=1 // pred_fallthru
      _
    // Predicated region
    $region10: #{gnn_forward.1} parent=1 // pred_check
      _
    $region11: #{gnn_forward.1} parent=1 // pred_check_branch
      %20 = sbr.rel (0) target = $region13
    $region12: #{gnn_forward.1} parent=1 // pred_region
      _
    $region13: #{gnn_forward.1} parent=1 // pred_fallthru
      _
    // Predicated region
    $region14: #{gnn_forward.1} parent=1 // pred_check
      _
    $region15: #{gnn_forward.1} parent=1 // pred_check_branch
      %22 = sbr.rel (0) target = $region17
    $region16: #{gnn_forward.1} parent=1 // pred_region
      _
    $region17: #{gnn_forward.1} parent=1 // pred_fallthru
      _
    // Predicated region
    $region18: #{gnn_forward.1} parent=1 // pred_check
      _
    $region19: #{gnn_forward.1} parent=1 // pred_check_branch
      %24 = sbr.rel (0) target = $region21
    $region20: #{gnn_forward.1} parent=1 // pred_region
      _
    $region21: #{gnn_forward.1} parent=1 // pred_fallthru
      _
    // Predicated region
    $region22: #{gnn_forward.1} parent=1 // pred_check
      _
    $region23: #{gnn_forward.1} parent=1 // pred_check_branch
      %26 = sbr.rel (0) target = $region25
    $region24: #{gnn_forward.1} parent=1 // pred_region
      _
    $region25: #{gnn_forward.1} parent=1 // pred_fallthru
      _
    %v27 = vld [vmem:[%s0] sm:$0xff]
    %v28 = vld [vmem:[%s1] sm:$0xff]
    %v29 = vld [vmem:[%s2] sm:$0xff]
    %vm30 = vcmask 64512
    %v32 = vsel %vm30, %v28, 0
    %34 = vmatprep.subr.mxu0 0.0
    %35 = vmatpush1.msra.mxu0 0.0
    %36 = vmatprep.subr.mxu0 0.0
    %37 = vmatpush1.msra.mxu0 0.0
    %38 = vmatprep.subr.mxu0 0.0
    %39 = vmatpush1.msra.mxu0 0.0
    %40 = vmatprep.subr.mxu0 0.0
    %41 = vmatpush1.msra.mxu0 0.0
    %42 = vmatprep.subr.mxu0 0.0
    %43 = vmatpush1.msra.mxu0 0.0
    %44 = vmatprep.subr.mxu0 0.0
    %45 = vmatpush1.msra.mxu0 0.0
    %46 = vmatprep.subr.mxu0 0.0
    %47 = vmatpush1.msra.mxu0 0.0
    %48 = vmatprep.subr.mxu0 0.0
    %49 = vmatpush1.msra.mxu0 0.0
    %50 = vmatprep.subr.mxu0 0.0
    %51 = vmatpush1.msra.mxu0 0.0
    %52 = vmatprep.subr.mxu0 0.0
    %53 = vmatpush1.msra.mxu0 0.0
    %54 = vmatprep.subr.mxu0 0.0
    %55 = vmatpush1.msra.mxu0 0.0
    %56 = vmatprep.subr.mxu0 0.0
    %57 = vmatpush1.msra.mxu0 0.0
    %58 = vmatprep.subr.mxu0 0.0
    %59 = vmatpush1.msra.mxu0 0.0
    %60 = vmatprep.subr.mxu0 0.0
    %61 = vmatpush1.msra.mxu0 0.0
    %62 = vmatprep.subr.mxu0 0.0
    %63 = vmatpush1.msra.mxu0 0.0
    %64 = vmatprep.subr.mxu0 0.0
    %65 = vmatpush1.msra.mxu0 %v29
    %66 = vmatprep.subr.mxu0 0.0
    %67 = vmatpush2.msra.mxu0 0.0
    %68 = vmatprep.subr.mxu0 0.0
    %69 = vmatpush2.msra.mxu0 0.0
    %70 = vmatprep.subr.mxu0 0.0
    %71 = vmatpush2.msra.mxu0 0.0
    %72 = vmatprep.subr.mxu0 0.0
    %73 = vmatpush2.msra.mxu0 0.0
    %74 = vmatprep.subr.mxu0 0.0
    %75 = vmatpush2.msra.mxu0 0.0
    %76 = vmatprep.subr.mxu0 0.0
    %77 = vmatpush2.msra.mxu0 0.0
    %78 = vmatprep.subr.mxu0 0.0
    %79 = vmatpush2.msra.mxu0 0.0
    %80 = vmatprep.subr.mxu0 0.0
    %81 = vmatpush2.msra.mxu0 0.0
    %82 = vmatprep.subr.mxu0 0.0
    %83 = vmatpush2.msra.mxu0 0.0
    %84 = vmatprep.subr.mxu0 0.0
    %85 = vmatpush2.msra.mxu0 0.0
    %86 = vmatprep.subr.mxu0 0.0
    %87 = vmatpush2.msra.mxu0 0.0
    %88 = vmatprep.subr.mxu0 0.0
    %89 = vmatpush2.msra.mxu0 0.0
    %90 = vmatprep.subr.mxu0 0.0
    %91 = vmatpush2.msra.mxu0 0.0
    %92 = vmatprep.subr.mxu0 0.0
    %93 = vmatpush2.msra.mxu0 0.0
    %94 = vmatprep.subr.mxu0 0.0
    %95 = vmatpush2.msra.mxu0 0.0
    %96 = vmatprep.subr.mxu0 0.0
    %97 = vmatpush2.msra.mxu0 0.0
    %98 = vmatprep.mubr.f32.mxu0 0.0
    %99 = vmatmul.mubr.f32.gmra.mxu0 %v32
    %v100 = vpop.f32.mrf.mxu0
    %v101 = vadd.f32 0.0, %v100
    %v102 = vpop.f32.mrf.mxu0
    %103 = vdwg.mxu0
    %v104 = vld [vmem:[%s3] sm:$0x1]
    %v106 = vlaneseq
    %v107 = vshrl.u32 %v106, 7
    %v108 = vsub.s32 0, %v107
    %v109 = vrot.slane %v104, %v108
    %v112 = vsel %vm30, %v27, 0
    %114 = vmatprep.subr.mxu0 0.0
    %115 = vmatpush1.msra.mxu0 0.0
    %116 = vmatprep.subr.mxu0 0.0
    %117 = vmatpush1.msra.mxu0 0.0
    %118 = vmatprep.subr.mxu0 0.0
    %119 = vmatpush1.msra.mxu0 0.0
    %120 = vmatprep.subr.mxu0 0.0
    %121 = vmatpush1.msra.mxu0 0.0
    %122 = vmatprep.subr.mxu0 0.0
    %123 = vmatpush1.msra.mxu0 0.0
    %124 = vmatprep.subr.mxu0 0.0
    %125 = vmatpush1.msra.mxu0 0.0
    %126 = vmatprep.subr.mxu0 0.0
    %127 = vmatpush1.msra.mxu0 0.0
    %128 = vmatprep.subr.mxu0 0.0
    %129 = vmatpush1.msra.mxu0 0.0
    %130 = vmatprep.subr.mxu0 0.0
    %131 = vmatpush1.msra.mxu0 0.0
    %132 = vmatprep.subr.mxu0 0.0
    %133 = vmatpush1.msra.mxu0 0.0
    %134 = vmatprep.subr.mxu0 0.0
    %135 = vmatpush1.msra.mxu0 0.0
    %136 = vmatprep.subr.mxu0 0.0
    %137 = vmatpush1.msra.mxu0 0.0
    %138 = vmatprep.subr.mxu0 0.0
    %139 = vmatpush1.msra.mxu0 0.0
    %140 = vmatprep.subr.mxu0 0.0
    %141 = vmatpush1.msra.mxu0 0.0
    %142 = vmatprep.subr.mxu0 0.0
    %143 = vmatpush1.msra.mxu0 0.0
    %144 = vmatprep.subr.mxu0 0.0
    %145 = vmatpush1.msra.mxu0 %v101
    %146 = vmatprep.subr.mxu0 0.0
    %147 = vmatpush2.msra.mxu0 0.0
    %148 = vmatprep.subr.mxu0 0.0
    %149 = vmatpush2.msra.mxu0 0.0
    %150 = vmatprep.subr.mxu0 0.0
    %151 = vmatpush2.msra.mxu0 0.0
    %152 = vmatprep.subr.mxu0 0.0
    %153 = vmatpush2.msra.mxu0 0.0
    %154 = vmatprep.subr.mxu0 0.0
    %155 = vmatpush2.msra.mxu0 0.0
    %156 = vmatprep.subr.mxu0 0.0
    %157 = vmatpush2.msra.mxu0 0.0
    %158 = vmatprep.subr.mxu0 0.0
    %159 = vmatpush2.msra.mxu0 0.0
    %160 = vmatprep.subr.mxu0 0.0
    %161 = vmatpush2.msra.mxu0 0.0
    %162 = vmatprep.subr.mxu0 0.0
    %163 = vmatpush2.msra.mxu0 0.0
    %164 = vmatprep.subr.mxu0 0.0
    %165 = vmatpush2.msra.mxu0 0.0
    %166 = vmatprep.subr.mxu0 0.0
    %167 = vmatpush2.msra.mxu0 0.0
    %168 = vmatprep.subr.mxu0 0.0
    %169 = vmatpush2.msra.mxu0 0.0
    %170 = vmatprep.subr.mxu0 0.0
    %171 = vmatpush2.msra.mxu0 0.0
    %172 = vmatprep.subr.mxu0 0.0
    %173 = vmatpush2.msra.mxu0 0.0
    %174 = vmatprep.subr.mxu0 0.0
    %175 = vmatpush2.msra.mxu0 0.0
    %176 = vmatprep.subr.mxu0 0.0
    %177 = vmatpush2.msra.mxu0 0.0
    %178 = vmatprep.mubr.f32.mxu0 0.0
    %179 = vmatmul.mubr.f32.gmra.mxu0 %v112
    %v180 = vpop.f32.mrf.mxu0
    %v181 = vadd.f32 %v109, %v180
    %v182 = vpop.f32.mrf.mxu0
    %183 = vdwg.mxu0
    %184 = vst [vmem:[#allocation2] sm:$0xff] %v181
    %v185 = vld [vmem:[%s4] sm:$0xff]
    %v187 = vsel %vm30, %v181, 0
    %189 = vmatprep.subr.mxu0 0.0
    %190 = vmatpush1.msra.mxu0 0.0
    %191 = vmatprep.subr.mxu0 0.0
    %192 = vmatpush1.msra.mxu0 0.0
    %193 = vmatprep.subr.mxu0 0.0
    %194 = vmatpush1.msra.mxu0 0.0
    %195 = vmatprep.subr.mxu0 0.0
    %196 = vmatpush1.msra.mxu0 0.0
    %197 = vmatprep.subr.mxu0 0.0
    %198 = vmatpush1.msra.mxu0 0.0
    %199 = vmatprep.subr.mxu0 0.0
    %200 = vmatpush1.msra.mxu0 0.0
    %201 = vmatprep.subr.mxu0 0.0
    %202 = vmatpush1.msra.mxu0 0.0
    %203 = vmatprep.subr.mxu0 0.0
    %204 = vmatpush1.msra.mxu0 0.0
    %205 = vmatprep.subr.mxu0 0.0
    %206 = vmatpush1.msra.mxu0 0.0
    %207 = vmatprep.subr.mxu0 0.0
    %208 = vmatpush1.msra.mxu0 0.0
    %209 = vmatprep.subr.mxu0 0.0
    %210 = vmatpush1.msra.mxu0 0.0
    %211 = vmatprep.subr.mxu0 0.0
    %212 = vmatpush1.msra.mxu0 0.0
    %213 = vmatprep.subr.mxu0 0.0
    %214 = vmatpush1.msra.mxu0 0.0
    %215 = vmatprep.subr.mxu0 0.0
    %216 = vmatpush1.msra.mxu0 0.0
    %217 = vmatprep.subr.mxu0 0.0
    %218 = vmatpush1.msra.mxu0 0.0
    %219 = vmatprep.subr.mxu0 0.0
    %220 = vmatpush1.msra.mxu0 %v185
    %221 = vmatprep.subr.mxu0 0.0
    %222 = vmatpush2.msra.mxu0 0.0
    %223 = vmatprep.subr.mxu0 0.0
    %224 = vmatpush2.msra.mxu0 0.0
    %225 = vmatprep.subr.mxu0 0.0
    %226 = vmatpush2.msra.mxu0 0.0
    %227 = vmatprep.subr.mxu0 0.0
    %228 = vmatpush2.msra.mxu0 0.0
    %229 = vmatprep.subr.mxu0 0.0
    %230 = vmatpush2.msra.mxu0 0.0
    %231 = vmatprep.subr.mxu0 0.0
    %232 = vmatpush2.msra.mxu0 0.0
    %233 = vmatprep.subr.mxu0 0.0
    %234 = vmatpush2.msra.mxu0 0.0
    %235 = vmatprep.subr.mxu0 0.0
    %236 = vmatpush2.msra.mxu0 0.0
    %237 = vmatprep.subr.mxu0 0.0
    %238 = vmatpush2.msra.mxu0 0.0
    %239 = vmatprep.subr.mxu0 0.0
    %240 = vmatpush2.msra.mxu0 0.0
    %241 = vmatprep.subr.mxu0 0.0
    %242 = vmatpush2.msra.mxu0 0.0
    %243 = vmatprep.subr.mxu0 0.0
    %244 = vmatpush2.msra.mxu0 0.0
    %245 = vmatprep.subr.mxu0 0.0
    %246 = vmatpush2.msra.mxu0 0.0
    %247 = vmatprep.subr.mxu0 0.0
    %248 = vmatpush2.msra.mxu0 0.0
    %249 = vmatprep.subr.mxu0 0.0
    %250 = vmatpush2.msra.mxu0 0.0
    %251 = vmatprep.subr.mxu0 0.0
    %252 = vmatpush2.msra.mxu0 0.0
    %253 = vmatprep.mubr.f32.mxu0 0.0
    %254 = vmatmul.mubr.f32.gmra.mxu0 %v187
    %v255 = vpop.f32.mrf.mxu0
    %v256 = vadd.f32 0.0, %v255
    %v257 = vpop.f32.mrf.mxu0
    %258 = vdwg.mxu0
    %v259 = vld [vmem:[%s5] sm:$0x1]
    %v261 = vlaneseq
    %v262 = vshrl.u32 %v261, 7
    %v263 = vsub.s32 0, %v262
    %v264 = vrot.slane %v259, %v263
    %266 = vmatprep.subr.mxu0 0.0
    %267 = vmatpush1.msra.mxu0 0.0
    %268 = vmatprep.subr.mxu0 0.0
    %269 = vmatpush1.msra.mxu0 0.0
    %270 = vmatprep.subr.mxu0 0.0
    %271 = vmatpush1.msra.mxu0 0.0
    %272 = vmatprep.subr.mxu0 0.0
    %273 = vmatpush1.msra.mxu0 0.0
    %274 = vmatprep.subr.mxu0 0.0
    %275 = vmatpush1.msra.mxu0 0.0
    %276 = vmatprep.subr.mxu0 0.0
    %277 = vmatpush1.msra.mxu0 0.0
    %278 = vmatprep.subr.mxu0 0.0
    %279 = vmatpush1.msra.mxu0 0.0
    %280 = vmatprep.subr.mxu0 0.0
    %281 = vmatpush1.msra.mxu0 0.0
    %282 = vmatprep.subr.mxu0 0.0
    %283 = vmatpush1.msra.mxu0 0.0
    %284 = vmatprep.subr.mxu0 0.0
    %285 = vmatpush1.msra.mxu0 0.0
    %286 = vmatprep.subr.mxu0 0.0
    %287 = vmatpush1.msra.mxu0 0.0
    %288 = vmatprep.subr.mxu0 0.0
    %289 = vmatpush1.msra.mxu0 0.0
    %290 = vmatprep.subr.mxu0 0.0
    %291 = vmatpush1.msra.mxu0 0.0
    %292 = vmatprep.subr.mxu0 0.0
    %293 = vmatpush1.msra.mxu0 0.0
    %294 = vmatprep.subr.mxu0 0.0
    %295 = vmatpush1.msra.mxu0 0.0
    %296 = vmatprep.subr.mxu0 0.0
    %297 = vmatpush1.msra.mxu0 %v256
    %298 = vmatprep.subr.mxu0 0.0
    %299 = vmatpush2.msra.mxu0 0.0
    %300 = vmatprep.subr.mxu0 0.0
    %301 = vmatpush2.msra.mxu0 0.0
    %302 = vmatprep.subr.mxu0 0.0
    %303 = vmatpush2.msra.mxu0 0.0
    %304 = vmatprep.subr.mxu0 0.0
    %305 = vmatpush2.msra.mxu0 0.0
    %306 = vmatprep.subr.mxu0 0.0
    %307 = vmatpush2.msra.mxu0 0.0
    %308 = vmatprep.subr.mxu0 0.0
    %309 = vmatpush2.msra.mxu0 0.0
    %310 = vmatprep.subr.mxu0 0.0
    %311 = vmatpush2.msra.mxu0 0.0
    %312 = vmatprep.subr.mxu0 0.0
    %313 = vmatpush2.msra.mxu0 0.0
    %314 = vmatprep.subr.mxu0 0.0
    %315 = vmatpush2.msra.mxu0 0.0
    %316 = vmatprep.subr.mxu0 0.0
    %317 = vmatpush2.msra.mxu0 0.0
    %318 = vmatprep.subr.mxu0 0.0
    %319 = vmatpush2.msra.mxu0 0.0
    %320 = vmatprep.subr.mxu0 0.0
    %321 = vmatpush2.msra.mxu0 0.0
    %322 = vmatprep.subr.mxu0 0.0
    %323 = vmatpush2.msra.mxu0 0.0
    %324 = vmatprep.subr.mxu0 0.0
    %325 = vmatpush2.msra.mxu0 0.0
    %326 = vmatprep.subr.mxu0 0.0
    %327 = vmatpush2.msra.mxu0 0.0
    %328 = vmatprep.subr.mxu0 0.0
    %329 = vmatpush2.msra.mxu0 0.0
    %330 = vmatprep.mubr.f32.mxu0 0.0
    %331 = vmatmul.mubr.f32.gmra.mxu0 %v112
    %v332 = vpop.f32.mrf.mxu0
    %v333 = vadd.f32 %v264, %v332
    %v334 = vpop.f32.mrf.mxu0
    %335 = vdwg.mxu0
    %336 = vst [vmem:[#allocation4] sm:$0xff] %v333
    // Predicated region
    $region26: #{gnn_forward.1} parent=1 // pred_check
      _
    $region27: #{gnn_forward.1} parent=1 // pred_check_branch
      %338 = sbr.rel (0) target = $region29
    $region28: #{gnn_forward.1} parent=1 // pred_region
      %s340 = ssub.s32 128, 128
      %341 = vsyncadd [#allocation3], %s340
      %s343 = sshll.u32 [#allocation2], 4
      %s344 = int_to_ptr.vmem [resolvable:$true] %s343
      %346 = dma.vmem_to_hbm [thread:$0]  %s344, 128, %s6, [#allocation3]
    $region29: #{gnn_forward.1} parent=1 // pred_fallthru
      _
    // Predicated region
    $region30: #{gnn_forward.1} parent=1 // pred_check
      _
    $region31: #{gnn_forward.1} parent=1 // pred_check_branch
      %348 = sbr.rel (0) target = $region33
    $region32: #{gnn_forward.1} parent=1 // pred_region
      %s350 = ssub.s32 128, 128
      %351 = vsyncadd [#allocation5], %s350
      %s353 = sshll.u32 [#allocation4], 4
      %s354 = int_to_ptr.vmem [resolvable:$true] %s353
      %356 = dma.vmem_to_hbm [thread:$0]  %s354, 128, %s7, [#allocation5]
    $region33: #{gnn_forward.1} parent=1 // pred_fallthru
      _
    // Predicated region
    $region34: #{gnn_forward.1} parent=1 // pred_check
      _
    $region35: #{gnn_forward.1} parent=1 // pred_check_branch
      %358 = sbr.rel (0) target = $region37
    $region36: #{gnn_forward.1} parent=1 // pred_region
      %359 = dma.done [#allocation3], 128
    $region37: #{gnn_forward.1} parent=1 // pred_fallthru
      _
    // Predicated region
    $region38: #{gnn_forward.1} parent=1 // pred_check
      _
    $region39: #{gnn_forward.1} parent=1 // pred_check_branch
      %361 = sbr.rel (0) target = $region41
    $region40: #{gnn_forward.1} parent=1 // pred_region
      %362 = dma.done [#allocation5], 128
    $region41: #{gnn_forward.1} parent=1 // pred_fallthru
      _
    %363 = vsyncpa [#allocation3], 1
    %364 = vsyncpa [#allocation5], 1

</llo_original>
